<compile_context>
chip_gen: v6e
topology: v6e:2x2x1
jax: 0.10.0
libtpu: 0.0.40
codegen_flags: <defaults>
</compile_context>

<pallas_src>
import functools

import jax
import jax.numpy as jnp
from jax.experimental import pallas as pl
from jax.experimental.pallas import tpu as pltpu


def _round_up(x, m):
    return ((x + m - 1) // m) * m


def _mlp_kernel(x_ref, slab_ref, o_ref, *, dp, offs, matmul_dtype):
    """One batch tile: y = fc4(relu(fc3(relu(fc2(relu(fc1(x)))))))."""
    r_b1, r_w2, r_b2, r_w3, r_b3, r_w4, r_b4 = offs

    x = x_ref[...].astype(matmul_dtype)                        # (T, dp)

    # fc1 + ReLU  (MXU, f32 accumulate)
    w1 = slab_ref[0:dp, 0:64].astype(matmul_dtype)
    h = jnp.dot(x, w1, preferred_element_type=jnp.float32)
    h = jnp.maximum(h + slab_ref[r_b1:r_b1 + 1, 0:64], 0.0)

    # fc2 + ReLU
    w2 = slab_ref[r_w2:r_w2 + 64, 0:32].astype(matmul_dtype)
    h = jnp.dot(h.astype(matmul_dtype), w2, preferred_element_type=jnp.float32)
    h = jnp.maximum(h + slab_ref[r_b2:r_b2 + 1, 0:32], 0.0)

    # fc3 + ReLU
    w3 = slab_ref[r_w3:r_w3 + 32, 0:16].astype(matmul_dtype)
    h = jnp.dot(h.astype(matmul_dtype), w3, preferred_element_type=jnp.float32)
    h = jnp.maximum(h + slab_ref[r_b3:r_b3 + 1, 0:16], 0.0)

    # fc4 (output width 1): VPU multiply + XLU lane reduction, skip the MXU.
    w4_row = slab_ref[r_w4:r_w4 + 1, 0:16]                     # (1, 16) == W4.T
    b4 = slab_ref[r_b4:r_b4 + 1, 0:1]                          # (1, 1)
    y = jnp.sum(h * w4_row, axis=-1)                           # (T,)
    o_ref[...] = y[None, :] + b4                               # (1, T) lane-dense


def simple_nn_forward(x, params, *, tile_b=512, matmul_dtype=jnp.float32):
    """x: (B, D) float32. params: w{i} as (in, out), b{i} as (1, out)."""
    B, D = x.shape
    dp = _round_up(max(D, 1), 8)

    # 8-aligned row offsets inside the packed parameter slab.
    r_b1 = dp
    r_w2 = r_b1 + 8
    r_b2 = r_w2 + 64
    r_w3 = r_b2 + 8
    r_b3 = r_w3 + 32
    r_w4 = r_b3 + 8
    r_b4 = r_w4 + 8
    n_rows = r_b4 + 8

    # One (n_rows, 128) f32 slab holding every weight and bias (zero padded).
    slab = jnp.zeros((n_rows, 128), jnp.float32)
    slab = slab.at[0:D, 0:64].set(params["w1"])
    slab = slab.at[r_b1, 0:64].set(params["b1"].reshape(64))
    slab = slab.at[r_w2:r_w2 + 64, 0:32].set(params["w2"])
    slab = slab.at[r_b2, 0:32].set(params["b2"].reshape(32))
    slab = slab.at[r_w3:r_w3 + 32, 0:16].set(params["w3"])
    slab = slab.at[r_b3, 0:16].set(params["b3"].reshape(16))
    slab = slab.at[r_w4, 0:16].set(params["w4"].reshape(16))   # W4.T as one row
    slab = slab.at[r_b4, 0:1].set(params["b4"].reshape(1))

    # Batch tiling: one tile for small B, else 512-row tiles (multiple of 128
    # so the lane-dense (1, tile_b) output block is unmasked-store friendly).
    if B <= tile_b:
        tb = _round_up(B, 8)
    else:
        tb = tile_b
    b_pad = _round_up(B, tb)
    n_tiles = b_pad // tb

    x_pad = jnp.zeros((b_pad, dp), jnp.float32)
    x_pad = x_pad.at[:B, :D].set(x.astype(jnp.float32))

    kernel = functools.partial(
        _mlp_kernel,
        dp=dp,
        offs=(r_b1, r_w2, r_b2, r_w3, r_b3, r_w4, r_b4),
        matmul_dtype=matmul_dtype,
    )

    out_row = pl.pallas_call(
        kernel,
        out_shape=jax.ShapeDtypeStruct((1, b_pad), jnp.float32),
        grid_spec=pltpu.PrefetchScalarGridSpec(
            num_scalar_prefetch=0,
            grid=(n_tiles,),
            in_specs=[
                pl.BlockSpec((tb, dp), lambda i: (i, 0)),          # x tile
                pl.BlockSpec((n_rows, 128), lambda i: (0, 0)),     # resident weights
            ],
            out_specs=pl.BlockSpec((1, tb), lambda i: (0, i)),     # lane-dense out
        ),
        compiler_params=pltpu.CompilerParams(
            dimension_semantics=("parallel",)),
    )(x_pad, slab)

    return out_row[0, :B].reshape(B, 1)


def init_params(key, in_features):
    """Deterministic init mirroring nn.Linear default (uniform +/- 1/sqrt(fan_in))."""
    dims = [(in_features, 64), (64, 32), (32, 16), (16, 1)]
    params = {}
    for i, (fan_in, fan_out) in enumerate(dims, start=1):
        key, kw, kb = jax.random.split(key, 3)
        bound = 1.0 / jnp.sqrt(jnp.float32(fan_in))
        params[f"w{i}"] = jax.random.uniform(
            kw, (fan_in, fan_out), jnp.float32, -bound, bound)
        params[f"b{i}"] = jax.random.uniform(
            kb, (1, fan_out), jnp.float32, -bound, bound)
    return params


def reference_forward(x, params):
    h = jnp.maximum(x @ params["w1"] + params["b1"], 0.0)
    h = jnp.maximum(h @ params["w2"] + params["b2"], 0.0)
    h = jnp.maximum(h @ params["w3"] + params["b3"], 0.0)
    return h @ params["w4"] + params["b4"]


if __name__ == "__main__":
    key = jax.random.PRNGKey(0)
    batch, in_features = 8, 8  # synthetic stand-in for X.shape[1]

    key, kx, kp = jax.random.split(key, 3)
    # Standardized (zero-mean, unit-var-ish) inputs, mimicking StandardScaler output.
    x = jax.random.normal(kx, (batch, in_features), dtype=jnp.float32)
    params = init_params(kp, in_features)

    out = simple_nn_forward(x, params)
    out = jax.block_until_ready(out)

    ref = reference_forward(x, params)
    assert out.shape == (batch, 1), out.shape
    assert jnp.allclose(out, ref, atol=1e-5, rtol=1e-5), "mismatch vs reference"

    print("KERNEL_OK")
</pallas_src>

<mosaic_0001>
module attributes {stable_mosaic.version = 11 : i64} {
  func.func @_mlp_kernel(%arg0: i32, %arg1: memref<8x8xf32, #tpu.memory_space<vmem>>, %arg2: memref<144x128xf32, #tpu.memory_space<vmem>>, %arg3: memref<1x8xf32, #tpu.memory_space<vmem>>) attributes {dimension_semantics = [#tpu.dimension_semantics<parallel>], iteration_bounds = array<i64: 1>, scalar_prefetch = 0 : i64, scratch_operands = 0 : i64, tpu.core_type = #tpu.core_type<tc>, window_params = [{transform_indices = @transform_0, window_bounds = array<i64: 8, 8>}, {pipeline_mode = #tpu.pipeline_mode<synchronous>, transform_indices = @transform_1, window_bounds = array<i64: 144, 128>}, {transform_indices = @transform_2, window_bounds = array<i64: 1, 8>}]} {
    %c0 = arith.constant 0 : index
    %c0_0 = arith.constant 0 : index
    %0 = vector.load %arg1[%c0, %c0_0] : memref<8x8xf32, #tpu.memory_space<vmem>>, vector<8x8xf32>
    %c0_1 = arith.constant 0 : index
    %c0_2 = arith.constant 0 : index
    %1 = vector.load %arg2[%c0_1, %c0_2] : memref<144x128xf32, #tpu.memory_space<vmem>>, vector<8x64xf32>
    %cst = arith.constant dense<0.000000e+00> : vector<8x64xf32>
    %2 = tpu.matmul %0, %1, %cst {dimension_numbers = #tpu.dot_dimension_numbers<[1], [0], [0], [1], [0, 0, 1, 1], [], []>} : vector<8x8xf32>, vector<8x64xf32>, vector<8x64xf32> -> vector<8x64xf32>
    %c8 = arith.constant 8 : index
    %c0_3 = arith.constant 0 : index
    %3 = vector.load %arg2[%c8, %c0_3] : memref<144x128xf32, #tpu.memory_space<vmem>>, vector<1x64xf32>
    %4 = vector.broadcast %3 : vector<1x64xf32> to vector<8x64xf32>
    %5 = arith.addf %2, %4 : vector<8x64xf32>
    %cst_4 = arith.constant 0.000000e+00 : f32
    %6 = vector.broadcast %cst_4 : f32 to vector<8x64xf32>
    %7 = arith.maximumf %5, %6 : vector<8x64xf32>
    %c16 = arith.constant 16 : index
    %c0_5 = arith.constant 0 : index
    %8 = vector.load %arg2[%c16, %c0_5] : memref<144x128xf32, #tpu.memory_space<vmem>>, vector<64x32xf32>
    %cst_6 = arith.constant dense<0.000000e+00> : vector<8x32xf32>
    %9 = tpu.matmul %7, %8, %cst_6 {dimension_numbers = #tpu.dot_dimension_numbers<[1], [0], [0], [1], [0, 0, 1, 1], [], []>} : vector<8x64xf32>, vector<64x32xf32>, vector<8x32xf32> -> vector<8x32xf32>
    %c80 = arith.constant 80 : index
    %c0_7 = arith.constant 0 : index
    %10 = vector.load %arg2[%c80, %c0_7] : memref<144x128xf32, #tpu.memory_space<vmem>>, vector<1x32xf32>
    %11 = vector.broadcast %10 : vector<1x32xf32> to vector<8x32xf32>
    %12 = arith.addf %9, %11 : vector<8x32xf32>
    %cst_8 = arith.constant 0.000000e+00 : f32
    %13 = vector.broadcast %cst_8 : f32 to vector<8x32xf32>
    %14 = arith.maximumf %12, %13 : vector<8x32xf32>
    %c88 = arith.constant 88 : index
    %c0_9 = arith.constant 0 : index
    %15 = vector.load %arg2[%c88, %c0_9] : memref<144x128xf32, #tpu.memory_space<vmem>>, vector<32x16xf32>
    %cst_10 = arith.constant dense<0.000000e+00> : vector<8x16xf32>
    %16 = tpu.matmul %14, %15, %cst_10 {dimension_numbers = #tpu.dot_dimension_numbers<[1], [0], [0], [1], [0, 0, 1, 1], [], []>} : vector<8x32xf32>, vector<32x16xf32>, vector<8x16xf32> -> vector<8x16xf32>
    %c120 = arith.constant 120 : index
    %c0_11 = arith.constant 0 : index
    %17 = vector.load %arg2[%c120, %c0_11] : memref<144x128xf32, #tpu.memory_space<vmem>>, vector<1x16xf32>
    %18 = vector.broadcast %17 : vector<1x16xf32> to vector<8x16xf32>
    %19 = arith.addf %16, %18 : vector<8x16xf32>
    %cst_12 = arith.constant 0.000000e+00 : f32
    %20 = vector.broadcast %cst_12 : f32 to vector<8x16xf32>
    %21 = arith.maximumf %19, %20 : vector<8x16xf32>
    %c128 = arith.constant 128 : index
    %c0_13 = arith.constant 0 : index
    %22 = vector.load %arg2[%c128, %c0_13] : memref<144x128xf32, #tpu.memory_space<vmem>>, vector<1x16xf32>
    %c136 = arith.constant 136 : index
    %c0_14 = arith.constant 0 : index
    %23 = vector.load %arg2[%c136, %c0_14] : memref<144x128xf32, #tpu.memory_space<vmem>>, vector<1x1xf32>
    %24 = vector.broadcast %22 : vector<1x16xf32> to vector<8x16xf32>
    %25 = arith.mulf %21, %24 : vector<8x16xf32>
    %cst_15 = arith.constant dense<0.000000e+00> : vector<8xf32>
    %26 = vector.multi_reduction <add>, %25, %cst_15 [1] : vector<8x16xf32> to vector<8xf32>
    %27 = vector.shape_cast %26 : vector<8xf32> to vector<1x8xf32>
    %28 = vector.broadcast %23 : vector<1x1xf32> to vector<1x8xf32>
    %29 = arith.addf %27, %28 : vector<1x8xf32>
    %c0_16 = arith.constant 0 : index
    %c0_17 = arith.constant 0 : index
    %30 = vector.load %arg3[%c0_16, %c0_17] : memref<1x8xf32, #tpu.memory_space<vmem>>, vector<1x8xf32>
    tpu.vector_store %arg3[%c0_16, %c0_17], %29 {strides = array<i32>} : memref<1x8xf32, #tpu.memory_space<vmem>>, vector<1x8xf32>,
    return
  }
  func.func @transform_0(%arg0: i32) -> (i32, i32) {
    %c0_i32 = arith.constant 0 : i32
    %c0_i32_0 = arith.constant 0 : i32
    return %arg0, %c0_i32 : i32, i32
  }
  func.func @transform_1(%arg0: i32) -> (i32, i32) {
    %c0_i32 = arith.constant 0 : i32
    %c0_i32_0 = arith.constant 0 : i32
    %c0_i32_1 = arith.constant 0 : i32
    return %c0_i32, %c0_i32_0 : i32, i32
  }
  func.func @transform_2(%arg0: i32) -> (i32, i32) {
    %c0_i32 = arith.constant 0 : i32
    %c0_i32_0 = arith.constant 0 : i32
    return %c0_i32, %arg0 : i32, i32
  }
}

</mosaic_0001>

<llo_original>
// kernel: tpu_custom_call.1
$region0: #{tpu_custom_call.1}
  #allocation0 [shape = 'u32[]', space=smem, size = 0x4, offset = 0x4, fixed_abs, tag = 'smem constant byte address 0x4 - core index']
  #allocation1 [shape = 'u32[144,128]{1,0:T(1,128)}', space=vmem, size = 0x12000, scoped, tag = 'internal scratch']
  %s0 = inlined_call_operand.hbm [shape: f32[8,8], index: 0, kind: input, shape index: {}]
  %s1 = inlined_call_operand.hbm [shape: f32[144,128], index: 1, kind: input, shape index: {}]
  %s2 = inlined_call_operand.hbm [shape: f32[1,8], index: 2, kind: output, shape index: {}]
  %s3 = sld [smem:[#allocation0]]
  $region26: #{tpu_custom_call.1} parent=0
    _
  %s5 = ssub.s32 1, %s3
  %s6 = scalar_select 0, %s5, %s3
  $region1: #{tpu_custom_call.1} parent=0
    #allocation2 [shape = 'u8[4096]{0}', space=vmem, size = 0x1000, scoped, tag = 'input window, operand 0, single buffered']
    #allocation3 [shape = 's32[1]{0}', space=sflag, size = 0x4, scoped, tag = 'scoped memory for tpu_custom_call.1']
    #allocation4 [shape = 's32[1]{0}', space=sflag, size = 0x4, scoped, tag = 'scoped memory for tpu_custom_call.1']
    #allocation5 [shape = 'u8[73728]{0}', space=vmem, size = 0x12000, scoped, tag = 'input window, operand 1, single buffered']
    #allocation6 [shape = 's32[1]{0}', space=sflag, size = 0x4, scoped, tag = 'scoped memory for tpu_custom_call.1']
    #allocation7 [shape = 'u8[512]{0}', space=vmem, size = 0x400, scoped, tag = 'output window, operand 0, single buffered']
    %7 = vsyncpa [#allocation3], 0
    %8 = vsyncpa [#allocation6], 0
    %9 = vsyncpa [#allocation4], 0
    // Predicated region
    $region2: #{tpu_custom_call.1} parent=1 // pred_check
      _
    $region3: #{tpu_custom_call.1} parent=1 // pred_check_branch
      %11 = sbr.rel (0) target = $region5
    $region4: #{tpu_custom_call.1} parent=1 // pred_region
      %s13 = ssub.s32 128, 128
      %14 = vsyncadd [#allocation3], %s13
      %s16 = sshll.u32 [#allocation2], 4
      %s17 = int_to_ptr.vmem [resolvable:$true] %s16
      %19 = dma.hbm_to_vmem [thread:$0]  %s0, 128, %s17, [#allocation3]
    $region5: #{tpu_custom_call.1} parent=1 // pred_fallthru
      _
    // Predicated region
    $region6: #{tpu_custom_call.1} parent=1 // pred_check
      _
    $region7: #{tpu_custom_call.1} parent=1 // pred_check_branch
      %21 = sbr.rel (0) target = $region9
    $region8: #{tpu_custom_call.1} parent=1 // pred_region
      %s23 = ssub.s32 2304, 2304
      %24 = vsyncadd [#allocation6], %s23
      %s25 = sshll.u32 [#allocation5], 4
      %s26 = int_to_ptr.vmem [resolvable:$true] %s25
      %31 = dma.hbm_to_vmem [thread:$0]  %s1, 2304, %s26, [#allocation6], 128, 128, 8
    $region9: #{tpu_custom_call.1} parent=1 // pred_fallthru
      _
    // Predicated region
    $region10: #{tpu_custom_call.1} parent=1 // pred_check
      _
    $region11: #{tpu_custom_call.1} parent=1 // pred_check_branch
      %33 = sbr.rel (0) target = $region13
    $region12: #{tpu_custom_call.1} parent=1 // pred_region
      %34 = dma.done [#allocation3], 128
    $region13: #{tpu_custom_call.1} parent=1 // pred_fallthru
      _
    // Predicated region
    $region14: #{tpu_custom_call.1} parent=1 // pred_check
      _
    $region15: #{tpu_custom_call.1} parent=1 // pred_check_branch
      %36 = sbr.rel (0) target = $region17
    $region16: #{tpu_custom_call.1} parent=1 // pred_region
      %37 = dma.done [#allocation6], 2304
    $region17: #{tpu_custom_call.1} parent=1 // pred_fallthru
      _
    %v38 = vld [vmem:[#allocation2] sm:$0xff]
    %v39 = vld [vmem:[#allocation5] sm:$0xff]
    %v40 = vld [vmem:[#allocation5 + $0x8] sm:$0x1]
    %v41 = vlaneseq
    %v42 = vshrl.u32 %v41, 7
    %v43 = vsub.s32 0, %v42
    %v44 = vrot.slane %v40, %v43
    %vm45 = vcmask 64512
    %v47 = vsel %vm45, %v38, 0
    %49 = vmatprep.subr.mxu0 0.0
    %50 = vmatpush1.msra.mxu0 0.0
    %51 = vmatprep.subr.mxu0 0.0
    %52 = vmatpush1.msra.mxu0 0.0
    %53 = vmatprep.subr.mxu0 0.0
    %54 = vmatpush1.msra.mxu0 0.0
    %55 = vmatprep.subr.mxu0 0.0
    %56 = vmatpush1.msra.mxu0 0.0
    %57 = vmatprep.subr.mxu0 0.0
    %58 = vmatpush1.msra.mxu0 0.0
    %59 = vmatprep.subr.mxu0 0.0
    %60 = vmatpush1.msra.mxu0 0.0
    %61 = vmatprep.subr.mxu0 0.0
    %62 = vmatpush1.msra.mxu0 0.0
    %63 = vmatprep.subr.mxu0 0.0
    %64 = vmatpush1.msra.mxu0 0.0
    %65 = vmatprep.subr.mxu0 0.0
    %66 = vmatpush1.msra.mxu0 0.0
    %67 = vmatprep.subr.mxu0 0.0
    %68 = vmatpush1.msra.mxu0 0.0
    %69 = vmatprep.subr.mxu0 0.0
    %70 = vmatpush1.msra.mxu0 0.0
    %71 = vmatprep.subr.mxu0 0.0
    %72 = vmatpush1.msra.mxu0 0.0
    %73 = vmatprep.subr.mxu0 0.0
    %74 = vmatpush1.msra.mxu0 0.0
    %75 = vmatprep.subr.mxu0 0.0
    %76 = vmatpush1.msra.mxu0 0.0
    %77 = vmatprep.subr.mxu0 0.0
    %78 = vmatpush1.msra.mxu0 0.0
    %79 = vmatprep.subr.mxu0 0.0
    %80 = vmatpush1.msra.mxu0 %v39
    %81 = vmatprep.subr.mxu0 0.0
    %82 = vmatpush2.msra.mxu0 0.0
    %83 = vmatprep.subr.mxu0 0.0
    %84 = vmatpush2.msra.mxu0 0.0
    %85 = vmatprep.subr.mxu0 0.0
    %86 = vmatpush2.msra.mxu0 0.0
    %87 = vmatprep.subr.mxu0 0.0
    %88 = vmatpush2.msra.mxu0 0.0
    %89 = vmatprep.subr.mxu0 0.0
    %90 = vmatpush2.msra.mxu0 0.0
    %91 = vmatprep.subr.mxu0 0.0
    %92 = vmatpush2.msra.mxu0 0.0
    %93 = vmatprep.subr.mxu0 0.0
    %94 = vmatpush2.msra.mxu0 0.0
    %95 = vmatprep.subr.mxu0 0.0
    %96 = vmatpush2.msra.mxu0 0.0
    %97 = vmatprep.subr.mxu0 0.0
    %98 = vmatpush2.msra.mxu0 0.0
    %99 = vmatprep.subr.mxu0 0.0
    %100 = vmatpush2.msra.mxu0 0.0
    %101 = vmatprep.subr.mxu0 0.0
    %102 = vmatpush2.msra.mxu0 0.0
    %103 = vmatprep.subr.mxu0 0.0
    %104 = vmatpush2.msra.mxu0 0.0
    %105 = vmatprep.subr.mxu0 0.0
    %106 = vmatpush2.msra.mxu0 0.0
    %107 = vmatprep.subr.mxu0 0.0
    %108 = vmatpush2.msra.mxu0 0.0
    %109 = vmatprep.subr.mxu0 0.0
    %110 = vmatpush2.msra.mxu0 0.0
    %111 = vmatprep.subr.mxu0 0.0
    %112 = vmatpush2.msra.mxu0 0.0
    %113 = vmatprep.mubr.f32.mxu0 0.0
    %114 = vmatmul.mubr.f32.gmra.mxu0 %v47
    %v115 = vpop.f32.mrf.mxu0
    %v116 = vadd.f32 %v44, %v115
    %v117 = vpop.f32.mrf.mxu0
    %118 = vdwg.mxu0
    %v119 = vmax.f32 %v116, 0.0
    %v120 = vld [vmem:[#allocation5 + $0x10] sm:$0xff]
    %v121 = vld [vmem:[#allocation5 + $0x18] sm:$0xff]
    %v122 = vld [vmem:[#allocation5 + $0x20] sm:$0xff]
    %v123 = vld [vmem:[#allocation5 + $0x28] sm:$0xff]
    %v124 = vld [vmem:[#allocation5 + $0x30] sm:$0xff]
    %v125 = vld [vmem:[#allocation5 + $0x38] sm:$0xff]
    %v126 = vld [vmem:[#allocation5 + $0x40] sm:$0xff]
    %v127 = vld [vmem:[#allocation5 + $0x48] sm:$0xff]
    %v128 = vld [vmem:[#allocation5 + $0x50] sm:$0x1]
    %v129 = vlaneseq
    %v130 = vshrl.u32 %v129, 7
    %v131 = vsub.s32 0, %v130
    %v132 = vrot.slane %v128, %v131
    %vm133 = vcmask 523264
    %v135 = vsel %vm133, %v119, 0
    %137 = vmatprep.subr.mxu0 0.0
    %138 = vmatpush1.msra.mxu0 0.0
    %139 = vmatprep.subr.mxu0 0.0
    %140 = vmatpush1.msra.mxu0 0.0
    %141 = vmatprep.subr.mxu0 0.0
    %142 = vmatpush1.msra.mxu0 0.0
    %143 = vmatprep.subr.mxu0 0.0
    %144 = vmatpush1.msra.mxu0 0.0
    %145 = vmatprep.subr.mxu0 0.0
    %146 = vmatpush1.msra.mxu0 0.0
    %147 = vmatprep.subr.mxu0 0.0
    %148 = vmatpush1.msra.mxu0 0.0
    %149 = vmatprep.subr.mxu0 0.0
    %150 = vmatpush1.msra.mxu0 0.0
    %151 = vmatprep.subr.mxu0 0.0
    %152 = vmatpush1.msra.mxu0 0.0
    %153 = vmatprep.subr.mxu0 0.0
    %154 = vmatpush1.msra.mxu0 %v127
    %155 = vmatprep.subr.mxu0 0.0
    %156 = vmatpush1.msra.mxu0 %v126
    %157 = vmatprep.subr.mxu0 0.0
    %158 = vmatpush1.msra.mxu0 %v125
    %159 = vmatprep.subr.mxu0 0.0
    %160 = vmatpush1.msra.mxu0 %v124
    %161 = vmatprep.subr.mxu0 0.0
    %162 = vmatpush1.msra.mxu0 %v123
    %163 = vmatprep.subr.mxu0 0.0
    %164 = vmatpush1.msra.mxu0 %v122
    %165 = vmatprep.subr.mxu0 0.0
    %166 = vmatpush1.msra.mxu0 %v121
    %167 = vmatprep.subr.mxu0 0.0
    %168 = vmatpush1.msra.mxu0 %v120
    %169 = vmatprep.subr.mxu0 0.0
    %170 = vmatpush2.msra.mxu0 0.0
    %171 = vmatprep.subr.mxu0 0.0
    %172 = vmatpush2.msra.mxu0 0.0
    %173 = vmatprep.subr.mxu0 0.0
    %174 = vmatpush2.msra.mxu0 0.0
    %175 = vmatprep.subr.mxu0 0.0
    %176 = vmatpush2.msra.mxu0 0.0
    %177 = vmatprep.subr.mxu0 0.0
    %178 = vmatpush2.msra.mxu0 0.0
    %179 = vmatprep.subr.mxu0 0.0
    %180 = vmatpush2.msra.mxu0 0.0
    %181 = vmatprep.subr.mxu0 0.0
    %182 = vmatpush2.msra.mxu0 0.0
    %183 = vmatprep.subr.mxu0 0.0
    %184 = vmatpush2.msra.mxu0 0.0
    %185 = vmatprep.subr.mxu0 0.0
    %186 = vmatpush2.msra.mxu0 0.0
    %187 = vmatprep.subr.mxu0 0.0
    %188 = vmatpush2.msra.mxu0 0.0
    %189 = vmatprep.subr.mxu0 0.0
    %190 = vmatpush2.msra.mxu0 0.0
    %191 = vmatprep.subr.mxu0 0.0
    %192 = vmatpush2.msra.mxu0 0.0
    %193 = vmatprep.subr.mxu0 0.0
    %194 = vmatpush2.msra.mxu0 0.0
    %195 = vmatprep.subr.mxu0 0.0
    %196 = vmatpush2.msra.mxu0 0.0
    %197 = vmatprep.subr.mxu0 0.0
    %198 = vmatpush2.msra.mxu0 0.0
    %199 = vmatprep.subr.mxu0 0.0
    %200 = vmatpush2.msra.mxu0 0.0
    %201 = vmatprep.mubr.f32.mxu0 0.0
    %202 = vmatmul.mubr.f32.gmra.mxu0 %v135
    %v203 = vpop.f32.mrf.mxu0
    %v204 = vadd.f32 %v132, %v203
    %v205 = vpop.f32.mrf.mxu0
    %206 = vdwg.mxu0
    %v207 = vmax.f32 %v204, 0.0
    %v208 = vld [vmem:[#allocation5 + $0x58] sm:$0xff]
    %v209 = vld [vmem:[#allocation5 + $0x60] sm:$0xff]
    %v210 = vld [vmem:[#allocation5 + $0x68] sm:$0xff]
    %v211 = vld [vmem:[#allocation5 + $0x70] sm:$0xff]
    %v212 = vld [vmem:[#allocation5 + $0x78] sm:$0x1]
    %v213 = vlaneseq
    %v214 = vshrl.u32 %v213, 7
    %v215 = vsub.s32 0, %v214
    %v216 = vrot.slane %v212, %v215
    %vm217 = vcmask 261120
    %v219 = vsel %vm217, %v207, 0
    %221 = vmatprep.subr.mxu0 0.0
    %222 = vmatpush1.msra.mxu0 0.0
    %223 = vmatprep.subr.mxu0 0.0
    %224 = vmatpush1.msra.mxu0 0.0
    %225 = vmatprep.subr.mxu0 0.0
    %226 = vmatpush1.msra.mxu0 0.0
    %227 = vmatprep.subr.mxu0 0.0
    %228 = vmatpush1.msra.mxu0 0.0
    %229 = vmatprep.subr.mxu0 0.0
    %230 = vmatpush1.msra.mxu0 0.0
    %231 = vmatprep.subr.mxu0 0.0
    %232 = vmatpush1.msra.mxu0 0.0
    %233 = vmatprep.subr.mxu0 0.0
    %234 = vmatpush1.msra.mxu0 0.0
    %235 = vmatprep.subr.mxu0 0.0
    %236 = vmatpush1.msra.mxu0 0.0
    %237 = vmatprep.subr.mxu0 0.0
    %238 = vmatpush1.msra.mxu0 0.0
    %239 = vmatprep.subr.mxu0 0.0
    %240 = vmatpush1.msra.mxu0 0.0
    %241 = vmatprep.subr.mxu0 0.0
    %242 = vmatpush1.msra.mxu0 0.0
    %243 = vmatprep.subr.mxu0 0.0
    %244 = vmatpush1.msra.mxu0 0.0
    %245 = vmatprep.subr.mxu0 0.0
    %246 = vmatpush1.msra.mxu0 %v211
    %247 = vmatprep.subr.mxu0 0.0
    %248 = vmatpush1.msra.mxu0 %v210
    %249 = vmatprep.subr.mxu0 0.0
    %250 = vmatpush1.msra.mxu0 %v209
    %251 = vmatprep.subr.mxu0 0.0
    %252 = vmatpush1.msra.mxu0 %v208
    %253 = vmatprep.subr.mxu0 0.0
    %254 = vmatpush2.msra.mxu0 0.0
    %255 = vmatprep.subr.mxu0 0.0
    %256 = vmatpush2.msra.mxu0 0.0
    %257 = vmatprep.subr.mxu0 0.0
    %258 = vmatpush2.msra.mxu0 0.0
    %259 = vmatprep.subr.mxu0 0.0
    %260 = vmatpush2.msra.mxu0 0.0
    %261 = vmatprep.subr.mxu0 0.0
    %262 = vmatpush2.msra.mxu0 0.0
    %263 = vmatprep.subr.mxu0 0.0
    %264 = vmatpush2.msra.mxu0 0.0
    %265 = vmatprep.subr.mxu0 0.0
    %266 = vmatpush2.msra.mxu0 0.0
    %267 = vmatprep.subr.mxu0 0.0
    %268 = vmatpush2.msra.mxu0 0.0
    %269 = vmatprep.subr.mxu0 0.0
    %270 = vmatpush2.msra.mxu0 0.0
    %271 = vmatprep.subr.mxu0 0.0
    %272 = vmatpush2.msra.mxu0 0.0
    %273 = vmatprep.subr.mxu0 0.0
    %274 = vmatpush2.msra.mxu0 0.0
    %275 = vmatprep.subr.mxu0 0.0
    %276 = vmatpush2.msra.mxu0 0.0
    %277 = vmatprep.subr.mxu0 0.0
    %278 = vmatpush2.msra.mxu0 0.0
    %279 = vmatprep.subr.mxu0 0.0
    %280 = vmatpush2.msra.mxu0 0.0
    %281 = vmatprep.subr.mxu0 0.0
    %282 = vmatpush2.msra.mxu0 0.0
    %283 = vmatprep.subr.mxu0 0.0
    %284 = vmatpush2.msra.mxu0 0.0
    %285 = vmatprep.mubr.f32.mxu0 0.0
    %286 = vmatmul.mubr.f32.gmra.mxu0 %v219
    %v287 = vpop.f32.mrf.mxu0
    %v288 = vadd.f32 %v216, %v287
    %v289 = vpop.f32.mrf.mxu0
    %290 = vdwg.mxu0
    %v291 = vmax.f32 %v288, 0.0
    %v292 = vld [vmem:[#allocation5 + $0x80] sm:$0x1]
    %v293 = vld [vmem:[#allocation5 + $0x88] sm:$0x1]
    %v294 = vlaneseq
    %v295 = vshrl.u32 %v294, 7
    %v296 = vsub.s32 0, %v295
    %v297 = vrot.slane %v292, %v296
    %v298 = vmul.f32 %v291, %v297
    %vm299 = vcmask 130048
    %v300 = vsel %vm299, %v298, 0.0
    %301 = vadd.xlane.f32.xlu0 %v300
    %v302 = vpop.xlane.xlu0 %301
    %304 = vset.pattern.permute.xlu0 0
    %305 = vperm.xlu0 %304, %v293
    %v306 = vpop.permute.xlu0 %305
    %v307 = vlaneseq
    %v308 = vshrl.u32 %v307, 7
    %v309 = vsub.s32 0, %v308
    %v310 = vrot.slane %v306, %v309
    %v312 = vadd.f32 %v302, %v310
    %314 = vset.pattern.permute.xlu0 0
    %315 = vperm.xlu0 %314, %v312
    %v316 = vpop.permute.xlu0 %315
    %v317 = vlaneseq
    %v318 = vand.u32 %v317, 127
    %v319 = vlaneseq
    %v320 = vshrl.u32 %v319, 7
    %v321 = vsub.s32 %v318, %v320
    %v322 = vrot.slane %v316, %v321
    %vm324 = vcmask 57344
    %325 = vst.msk [vmem:[#allocation7] sm:$0x1] %vm324, %v322
    // Predicated region
    $region18: #{tpu_custom_call.1} parent=1 // pred_check
      _
    $region19: #{tpu_custom_call.1} parent=1 // pred_check_branch
      %327 = sbr.rel (0) target = $region21
    $region20: #{tpu_custom_call.1} parent=1 // pred_region
      %s329 = ssub.s32 16, 16
      %330 = vsyncadd [#allocation4], %s329
      %s332 = sshll.u32 [#allocation7], 4
      %s333 = int_to_ptr.vmem [resolvable:$true] %s332
      %335 = dma.vmem_to_hbm [thread:$0]  %s333, 16, %s2, [#allocation4]
    $region21: #{tpu_custom_call.1} parent=1 // pred_fallthru
      _
    // Predicated region
    $region22: #{tpu_custom_call.1} parent=1 // pred_check
      _
    $region23: #{tpu_custom_call.1} parent=1 // pred_check_branch
      %337 = sbr.rel (0) target = $region25
    $region24: #{tpu_custom_call.1} parent=1 // pred_region
      %338 = dma.done [#allocation4], 16
    $region25: #{tpu_custom_call.1} parent=1 // pred_fallthru
      _
    %339 = vsyncpa [#allocation3], 1
    %340 = vsyncpa [#allocation6], 1
    %341 = vsyncpa [#allocation4], 1

</llo_original>
